<compile_context>
chip_gen: v5e
topology: v5e:2x2
jax: 0.10.0
libtpu: 0.0.40
codegen_flags: <defaults>
</compile_context>

<pallas_src>
import functools

import numpy as np
import jax
import jax.numpy as jnp
from jax import lax
from jax.experimental import pallas as pl
from jax.experimental.pallas import tpu as pltpu


# --------------------------------------------------------------------------- #
# Kernel
# --------------------------------------------------------------------------- #
def _decoder_kernel(nm, tm, x_ref, w_ref, b_ref, tgt_ref,
                    scores_ref, loss_ref,
                    m_sc, s_sc, t_sc):
    """Fused Linear -> softmax -> cross-entropy.

    x_ref:      (TB, C)     fp32   category predictions (batch tile, resident per bi)
    w_ref:      (C, TM)     bf16   decoder weight slice (stored (in, out))
    b_ref:      (1, TM)     fp32   decoder bias slice
    tgt_ref:    (TB, 1)     int32  target movie ids
    scores_ref: (TB, M)     out    resident full score row (softmax probabilities)
    loss_ref:   (1, 1, 1)   fp32   sum of per-row NLL for this batch tile
    m_sc:       (TB, nm)    fp32   per-movie-tile local max
    s_sc:       (TB, nm)    fp32   per-movie-tile local exp-sum
    t_sc:       (TB, 1)     fp32   target-logit accumulator
    """
    mi = pl.program_id(1)

    @pl.when(mi == 0)
    def _init():
        m_sc[...] = jnp.full_like(m_sc, -jnp.inf)
        s_sc[...] = jnp.zeros_like(s_sc)
        t_sc[...] = jnp.zeros_like(t_sc)

    # MXU matmul (bf16 weights, f32 accumulation) + bias.
    logits = jnp.dot(x_ref[...].astype(w_ref.dtype), w_ref[...],
                     preferred_element_type=jnp.float32) + b_ref[...]

    m_loc = jnp.max(logits, axis=-1, keepdims=True)          # (TB, 1)
    p = jnp.exp(logits - m_loc)                               # (TB, TM)
    s_loc = jnp.sum(p, axis=-1, keepdims=True)                # (TB, 1)

    # Target-logit gather restricted to the current movie tile:
    # compare tile-local iota against (target - mi*tm) (scalar per row).
    col = lax.broadcasted_iota(jnp.int32, logits.shape, 1)
    tgt_local = tgt_ref[...] - mi * tm
    t_sc[...] += jnp.sum(jnp.where(col == tgt_local, logits, 0.0),
                         axis=-1, keepdims=True)

    if nm == 1:
        # Collapsed movie axis: weight is resident, finish in one shot.
        inv = pl.reciprocal(s_loc, approx=True)               # EUP reciprocal
        scores_ref[...] = (p * inv).astype(scores_ref.dtype)
        lse = m_loc + jnp.log(s_loc)                           # (TB, 1)
        nll = lse - t_sc[...]                                  # (TB, 1)
        loss_ref[...] = jnp.sum(nll).reshape(1, 1, 1)
    else:
        # Stash un-normalized probabilities for this tile (lane-aligned slice)
        # and the per-tile stats; the exp is spread across mi steps (hidden
        # under the weight DMA) instead of a serialized tail.
        tile_idx = lax.broadcasted_iota(jnp.int32, m_sc.shape, 1)
        m_sc[...] = jnp.where(tile_idx == mi, m_loc, m_sc[...])
        s_sc[...] = jnp.where(tile_idx == mi, s_loc, s_sc[...])
        start = pl.multiple_of(mi * tm, tm)
        scores_ref[:, pl.ds(start, tm)] = p.astype(scores_ref.dtype)

        @pl.when(mi == nm - 1)
        def _finalize():
            m_all = m_sc[...]                                  # (TB, nm)
            s_all = s_sc[...]                                  # (TB, nm)
            m_fin = jnp.max(m_all, axis=-1, keepdims=True)     # (TB, 1)
            corr = jnp.exp(m_all - m_fin)                      # (TB, nm)
            l = jnp.sum(s_all * corr, axis=-1, keepdims=True)  # (TB, 1)
            inv_l = pl.reciprocal(l, approx=True)
            scale_all = corr * inv_l                           # (TB, nm)
            # Cheap VPU rescale of the resident row, one static slice per tile.
            for i in range(nm):
                sl = scores_ref[:, i * tm:(i + 1) * tm].astype(jnp.float32)
                scores_ref[:, i * tm:(i + 1) * tm] = (
                    sl * scale_all[:, i:i + 1]).astype(scores_ref.dtype)
            lse = m_fin + jnp.log(l)                            # (TB, 1)
            nll = lse - t_sc[...]                               # (TB, 1)
            loss_ref[...] = jnp.sum(nll).reshape(1, 1, 1)


# --------------------------------------------------------------------------- #
# Tile planning (generation-aware)
# --------------------------------------------------------------------------- #
def _vmem_capacity_bytes():
    """Physical VMEM of the current TPU generation (fallback: 64 MiB = v7x)."""
    try:
        info = pltpu.get_tpu_info()
        cap = getattr(info, "vmem_capacity_bytes", None)
        if cap:
            return int(cap)
    except Exception:
        pass
    return 64 * 1024 * 1024


def _vmem_bytes(tb, tm, C, M, nm, sbytes, wbytes):
    """Rough VMEM estimate: double-buffered input tiles, resident output row,
    scratch, plus slack for in-kernel f32 temporaries (logits / p / mask)."""
    in_bufs = 2 * (tb * C * 4 + C * tm * wbytes + tm * 4 + tb * 4)
    out_bufs = 2 * (tb * M * sbytes + 4)
    scratch = 2 * tb * nm * 4 + tb * 4
    temps = 4 * tb * tm * 4
    return in_bufs + out_bufs + scratch + temps


def _plan_tiles(B, C, M, sbytes, wbytes, cap):
    budget = int(0.8 * cap)
    # 64 MiB-class chips (v7x) have 2 TensorCores: keep nb >= 2 so the
    # "parallel" batch axis can actually be split across both cores.
    two_core = cap <= 80 * 1024 * 1024

    tb_cands = [c for c in (256, 128, 64, 32, 16, 8) if c <= B and B % c == 0]
    if not tb_cands:
        tb_cands = [B]
    if two_core and B >= 16 and B % 2 == 0:
        tb_cands = sorted({min(c, B // 2) for c in tb_cands}, reverse=True)

    tm_cands = [c for c in (8192, 4096, 2048, 1024, 512, 256, 128)
                if c < M and M % c == 0]

    # Pass 1: collapse the movie axis (weight fully resident, read once).
    for tb in tb_cands:
        if _vmem_bytes(tb, M, C, M, 1, sbytes, wbytes) <= budget:
            return tb, M
    # Pass 2: movie-tiled fallback for very large M.
    for tb in tb_cands:
        for tm in tm_cands:
            if _vmem_bytes(tb, tm, C, M, M // tm, sbytes, wbytes) <= budget:
                return tb, tm
    # Last resort: smallest tiles we know how to make.
    return tb_cands[-1], (tm_cands[-1] if tm_cands else M)


# --------------------------------------------------------------------------- #
# Wrapper
# --------------------------------------------------------------------------- #
@functools.partial(jax.jit, static_argnames=("scores_dtype", "tb", "tm"))
def complete_model_forward(cat_pred, movie_targets, w, b, *,
                           scores_dtype=jnp.bfloat16, tb=None, tm=None):
    """Returns (item_rec_scores, loss) matching Complete_Model.forward.

    scores_dtype=jnp.bfloat16 halves the dominant HBM writeback stream; pass
    jnp.float32 for exact dtype parity with the PyTorch model.
    """
    B, C = cat_pred.shape
    M = w.shape[1]
    sbytes = np.dtype(scores_dtype).itemsize
    wbytes = np.dtype(w.dtype).itemsize
    cap = _vmem_capacity_bytes()

    if tb is None or tm is None:
        ptb, ptm = _plan_tiles(B, C, M, sbytes, wbytes, cap)
        tb = ptb if tb is None else tb
        tm = ptm if tm is None else tm
    assert B % tb == 0 and M % tm == 0, "batch / n_movies must tile evenly"
    nb, nm = B // tb, M // tm

    est = _vmem_bytes(tb, tm, C, M, nm, sbytes, wbytes)
    vmem_limit = int(min(int(0.9 * cap),
                         max(32 * 1024 * 1024, int(1.25 * est))))

    tgt = movie_targets.reshape(B, 1).astype(jnp.int32)
    kernel = functools.partial(_decoder_kernel, nm, tm)

    scores, loss_partial = pl.pallas_call(
        kernel,
        out_shape=(
            jax.ShapeDtypeStruct((B, M), scores_dtype),
            jax.ShapeDtypeStruct((nb, 1, 1), jnp.float32),
        ),
        grid_spec=pltpu.PrefetchScalarGridSpec(
            num_scalar_prefetch=0,
            grid=(nb, nm),
            in_specs=[
                pl.BlockSpec((tb, C), lambda bi, mi: (bi, 0)),   # x (resident per bi)
                pl.BlockSpec((C, tm), lambda bi, mi: (0, mi)),   # W slice (bf16 stream)
                pl.BlockSpec((1, tm), lambda bi, mi: (0, mi)),   # bias slice
                pl.BlockSpec((tb, 1), lambda bi, mi: (bi, 0)),   # targets
            ],
            out_specs=[
                pl.BlockSpec((tb, M), lambda bi, mi: (bi, 0)),       # resident score row
                pl.BlockSpec((1, 1, 1), lambda bi, mi: (bi, 0, 0)),  # per-tile NLL sum
            ],
            scratch_shapes=[
                pltpu.VMEM((tb, nm), jnp.float32),   # per-tile local max
                pltpu.VMEM((tb, nm), jnp.float32),   # per-tile local exp-sum
                pltpu.VMEM((tb, 1), jnp.float32),    # target-logit accumulator
            ],
        ),
        compiler_params=pltpu.CompilerParams(
            dimension_semantics=("parallel", "arbitrary"),
            vmem_limit_bytes=vmem_limit,
        ),
    )(cat_pred, w, b, tgt)

    loss = jnp.sum(loss_partial) / B   # CrossEntropyLoss default reduction='mean'
    return scores, loss


def init_decoder_params(key, cat_size, n_movies, dtype=jnp.bfloat16):
    """Deterministic init mimicking nn.Linear(cat_size, n_movies)."""
    kw, kb = jax.random.split(key)
    bound = 1.0 / jnp.sqrt(jnp.float32(cat_size))
    # torch stores weight (out, in); we store (in, out) for the kernel.
    w = jax.random.uniform(kw, (cat_size, n_movies), jnp.float32, -bound, bound)
    b = jax.random.uniform(kb, (1, n_movies), jnp.float32, -bound, bound)
    return w.astype(dtype), b


if __name__ == "__main__":
    # Small shapes consistent with the module (batch, cat_size, n_movies).
    B, CAT_SIZE, N_MOVIES = 16, 32, 512

    key = jax.random.PRNGKey(0)
    k_cat, k_tgt, k_param = jax.random.split(key, 3)

    # Ground-truth category predictions (use_ground_truth=True path).
    cat_pred = jax.random.uniform(k_cat, (B, CAT_SIZE), jnp.float32)
    movie_targets = jax.random.randint(k_tgt, (B,), 0, N_MOVIES, jnp.int32)
    w, b = init_decoder_params(k_param, CAT_SIZE, N_MOVIES)

    # Plain-JAX reference using the same bf16 weight / activation cast.
    logits_ref = jnp.dot(cat_pred.astype(jnp.bfloat16), w,
                         preferred_element_type=jnp.float32) + b
    scores_ref = jax.nn.softmax(logits_ref, axis=-1)
    nll_ref = (jax.nn.logsumexp(logits_ref, axis=-1)
               - logits_ref[jnp.arange(B), movie_targets])
    loss_ref = jnp.mean(nll_ref)

    # 1) Auto-planned path: movie axis collapsed (weight resident), bf16 scores.
    scores_a, loss_a = complete_model_forward(cat_pred, movie_targets, w, b)
    # 2) Explicit movie-tiled path (nm=4, fp32 scores) to exercise the tiled branch.
    scores_b, loss_b = complete_model_forward(
        cat_pred, movie_targets, w, b, scores_dtype=jnp.float32, tb=8, tm=128)
    jax.block_until_ready((scores_a, loss_a, scores_b, loss_b))

    assert jnp.allclose(scores_a.astype(jnp.float32), scores_ref,
                        atol=1e-3, rtol=3e-2), "scores (collapsed / bf16)"
    assert jnp.allclose(loss_a, loss_ref, atol=1e-2, rtol=1e-3), "loss (collapsed)"
    assert jnp.allclose(scores_b, scores_ref,
                        atol=1e-4, rtol=2e-2), "scores (tiled / f32)"
    assert jnp.allclose(loss_b, loss_ref, atol=1e-2, rtol=1e-3), "loss (tiled)"

    print("KERNEL_OK")
</pallas_src>

<mosaic_0001>
module attributes {stable_mosaic.version = 11 : i64} {
  func.func @_decoder_kernel(%arg0: i32, %arg1: i32, %arg2: memref<8x32xf32, #tpu.memory_space<vmem>>, %arg3: memref<32x512xbf16, #tpu.memory_space<vmem>>, %arg4: memref<1x512xf32, #tpu.memory_space<vmem>>, %arg5: memref<8x1xi32, #tpu.memory_space<vmem>>, %arg6: memref<8x512xbf16, #tpu.memory_space<vmem>>, %arg7: memref<1x1x1xf32, #tpu.memory_space<vmem>>, %arg8: memref<8x1xf32, #tpu.memory_space<vmem>>, %arg9: memref<8x1xf32, #tpu.memory_space<vmem>>, %arg10: memref<8x1xf32, #tpu.memory_space<vmem>>) attributes {dimension_semantics = [#tpu.dimension_semantics<parallel>, #tpu.dimension_semantics<arbitrary>], iteration_bounds = array<i64: 2, 1>, scalar_prefetch = 0 : i64, scratch_operands = 3 : i64, tpu.core_type = #tpu.core_type<tc>, window_params = [{transform_indices = @transform_0, window_bounds = array<i64: 8, 32>}, {transform_indices = @transform_1, window_bounds = array<i64: 32, 512>}, {transform_indices = @transform_2, window_bounds = array<i64: 1, 512>}, {transform_indices = @transform_3, window_bounds = array<i64: 8, 1>}, {transform_indices = @transform_4, window_bounds = array<i64: 8, 512>}, {transform_indices = @transform_5, window_bounds = array<i64: 1, 1, 1>}]} {
    %c0_i32 = arith.constant 0 : i32
    %0 = arith.cmpi eq, %arg1, %c0_i32 : i32
    %1 = arith.extui %0 : i1 to i32
    %c0_i32_0 = arith.constant 0 : i32
    %2 = arith.cmpi ne, %1, %c0_i32_0 : i32
    scf.if %2 {
      %cst_24 = arith.constant 0xFF800000 : f32
      %46 = vector.broadcast %cst_24 : f32 to vector<8x1xf32>
      %c0_25 = arith.constant 0 : index
      %c0_26 = arith.constant 0 : index
      %47 = vector.load %arg8[%c0_25, %c0_26] : memref<8x1xf32, #tpu.memory_space<vmem>>, vector<8x1xf32>
      tpu.vector_store %arg8[%c0_25, %c0_26], %46 {strides = array<i32>} : memref<8x1xf32, #tpu.memory_space<vmem>>, vector<8x1xf32>,
      %cst_27 = arith.constant 0.000000e+00 : f32
      %48 = vector.broadcast %cst_27 : f32 to vector<8x1xf32>
      %c0_28 = arith.constant 0 : index
      %c0_29 = arith.constant 0 : index
      %49 = vector.load %arg9[%c0_28, %c0_29] : memref<8x1xf32, #tpu.memory_space<vmem>>, vector<8x1xf32>
      tpu.vector_store %arg9[%c0_28, %c0_29], %48 {strides = array<i32>} : memref<8x1xf32, #tpu.memory_space<vmem>>, vector<8x1xf32>,
      %cst_30 = arith.constant 0.000000e+00 : f32
      %50 = vector.broadcast %cst_30 : f32 to vector<8x1xf32>
      %c0_31 = arith.constant 0 : index
      %c0_32 = arith.constant 0 : index
      %51 = vector.load %arg10[%c0_31, %c0_32] : memref<8x1xf32, #tpu.memory_space<vmem>>, vector<8x1xf32>
      tpu.vector_store %arg10[%c0_31, %c0_32], %50 {strides = array<i32>} : memref<8x1xf32, #tpu.memory_space<vmem>>, vector<8x1xf32>,
    } else {
    }
    %c0 = arith.constant 0 : index
    %c0_1 = arith.constant 0 : index
    %3 = vector.load %arg2[%c0, %c0_1] : memref<8x32xf32, #tpu.memory_space<vmem>>, vector<8x32xf32>
    %4 = arith.truncf %3 : vector<8x32xf32> to vector<8x32xbf16>
    %c0_2 = arith.constant 0 : index
    %c0_3 = arith.constant 0 : index
    %5 = vector.load %arg3[%c0_2, %c0_3] : memref<32x512xbf16, #tpu.memory_space<vmem>>, vector<32x512xbf16>
    %cst = arith.constant dense<0.000000e+00> : vector<8x512xf32>
    %6 = tpu.matmul %4, %5, %cst {dimension_numbers = #tpu.dot_dimension_numbers<[1], [0], [0], [1], [0, 0, 1, 1], [], []>} : vector<8x32xbf16>, vector<32x512xbf16>, vector<8x512xf32> -> vector<8x512xf32>
    %c0_4 = arith.constant 0 : index
    %c0_5 = arith.constant 0 : index
    %7 = vector.load %arg4[%c0_4, %c0_5] : memref<1x512xf32, #tpu.memory_space<vmem>>, vector<1x512xf32>
    %8 = vector.broadcast %7 : vector<1x512xf32> to vector<8x512xf32>
    %9 = arith.addf %6, %8 : vector<8x512xf32>
    %cst_6 = arith.constant dense<0xFF800000> : vector<8xf32>
    %10 = vector.multi_reduction <maximumf>, %9, %cst_6 [1] : vector<8x512xf32> to vector<8xf32>
    %11 = vector.shape_cast %10 : vector<8xf32> to vector<8x1xf32>
    %12 = vector.broadcast %11 : vector<8x1xf32> to vector<8x512xf32>
    %13 = arith.subf %9, %12 : vector<8x512xf32>
    %14 = math.exp %13 : vector<8x512xf32>
    %cst_7 = arith.constant dense<0.000000e+00> : vector<8xf32>
    %15 = vector.multi_reduction <add>, %14, %cst_7 [1] : vector<8x512xf32> to vector<8xf32>
    %16 = vector.shape_cast %15 : vector<8xf32> to vector<8x1xf32>
    %17 = tpu.iota {dimensions = array<i32: 1>} : vector<8x512xi32>
    %c0_8 = arith.constant 0 : index
    %c0_9 = arith.constant 0 : index
    %18 = vector.load %arg5[%c0_8, %c0_9] : memref<8x1xi32, #tpu.memory_space<vmem>>, vector<8x1xi32>
    %c512_i32 = arith.constant 512 : i32
    %19 = arith.muli %arg1, %c512_i32 : i32
    %20 = vector.broadcast %19 : i32 to vector<8x1xi32>
    %21 = arith.subi %18, %20 : vector<8x1xi32>
    %c0_10 = arith.constant 0 : index
    %c0_11 = arith.constant 0 : index
    %22 = vector.load %arg10[%c0_10, %c0_11] : memref<8x1xf32, #tpu.memory_space<vmem>>, vector<8x1xf32>
    %23 = vector.broadcast %21 : vector<8x1xi32> to vector<8x512xi32>
    %24 = arith.cmpi eq, %17, %23 : vector<8x512xi32>
    %cst_12 = arith.constant 0.000000e+00 : f32
    %25 = vector.broadcast %cst_12 : f32 to vector<8x512xf32>
    %26 = arith.select %24, %9, %25 : vector<8x512xi1>, vector<8x512xf32>
    %cst_13 = arith.constant dense<0.000000e+00> : vector<8xf32>
    %27 = vector.multi_reduction <add>, %26, %cst_13 [1] : vector<8x512xf32> to vector<8xf32>
    %28 = vector.shape_cast %27 : vector<8xf32> to vector<8x1xf32>
    %29 = arith.addf %22, %28 : vector<8x1xf32>
    %c0_14 = arith.constant 0 : index
    %c0_15 = arith.constant 0 : index
    %30 = vector.load %arg10[%c0_14, %c0_15] : memref<8x1xf32, #tpu.memory_space<vmem>>, vector<8x1xf32>
    tpu.vector_store %arg10[%c0_14, %c0_15], %29 {strides = array<i32>} : memref<8x1xf32, #tpu.memory_space<vmem>>, vector<8x1xf32>,
    %31 = tpu.reciprocal %16 {approx = true} : vector<8x1xf32> -> vector<8x1xf32>
    %32 = vector.broadcast %31 : vector<8x1xf32> to vector<8x512xf32>
    %33 = arith.mulf %14, %32 : vector<8x512xf32>
    %34 = arith.truncf %33 : vector<8x512xf32> to vector<8x512xbf16>
    %c0_16 = arith.constant 0 : index
    %c0_17 = arith.constant 0 : index
    %35 = vector.load %arg6[%c0_16, %c0_17] : memref<8x512xbf16, #tpu.memory_space<vmem>>, vector<8x512xbf16>
    tpu.vector_store %arg6[%c0_16, %c0_17], %34 {strides = array<i32>} : memref<8x512xbf16, #tpu.memory_space<vmem>>, vector<8x512xbf16>,
    %36 = math.log %16 : vector<8x1xf32>
    %37 = arith.addf %11, %36 : vector<8x1xf32>
    %c0_18 = arith.constant 0 : index
    %c0_19 = arith.constant 0 : index
    %38 = vector.load %arg10[%c0_18, %c0_19] : memref<8x1xf32, #tpu.memory_space<vmem>>, vector<8x1xf32>
    %39 = arith.subf %37, %38 : vector<8x1xf32>
    %40 = vector.shape_cast %39 : vector<8x1xf32> to vector<1x8x1xf32>
    %cst_20 = arith.constant dense<0.000000e+00> : vector<1xf32>
    %41 = vector.multi_reduction <add>, %40, %cst_20 [1, 2] : vector<1x8x1xf32> to vector<1xf32>
    %42 = vector.shape_cast %41 : vector<1xf32> to vector<1x1x1xf32>
    %43 = vector.extract %42[0, 0, 0] : f32 from vector<1x1x1xf32>
    %44 = vector.broadcast %43 : f32 to vector<1x1x1xf32>
    %c0_21 = arith.constant 0 : index
    %c0_22 = arith.constant 0 : index
    %c0_23 = arith.constant 0 : index
    %45 = vector.load %arg7[%c0_21, %c0_22, %c0_23] : memref<1x1x1xf32, #tpu.memory_space<vmem>>, vector<1x1x1xf32>
    tpu.vector_store %arg7[%c0_21, %c0_22, %c0_23], %44 {strides = array<i32>} : memref<1x1x1xf32, #tpu.memory_space<vmem>>, vector<1x1x1xf32>,
    return
  }
  func.func @transform_0(%arg0: i32, %arg1: i32) -> (i32, i32) {
    %c0_i32 = arith.constant 0 : i32
    %c0_i32_0 = arith.constant 0 : i32
    return %arg0, %c0_i32 : i32, i32
  }
  func.func @transform_1(%arg0: i32, %arg1: i32) -> (i32, i32) {
    %c0_i32 = arith.constant 0 : i32
    %c0_i32_0 = arith.constant 0 : i32
    return %c0_i32, %arg1 : i32, i32
  }
  func.func @transform_2(%arg0: i32, %arg1: i32) -> (i32, i32) {
    %c0_i32 = arith.constant 0 : i32
    %c0_i32_0 = arith.constant 0 : i32
    return %c0_i32, %arg1 : i32, i32
  }
  func.func @transform_3(%arg0: i32, %arg1: i32) -> (i32, i32) {
    %c0_i32 = arith.constant 0 : i32
    %c0_i32_0 = arith.constant 0 : i32
    return %arg0, %c0_i32 : i32, i32
  }
  func.func @transform_4(%arg0: i32, %arg1: i32) -> (i32, i32) {
    %c0_i32 = arith.constant 0 : i32
    %c0_i32_0 = arith.constant 0 : i32
    return %arg0, %c0_i32 : i32, i32
  }
  func.func @transform_5(%arg0: i32, %arg1: i32) -> (i32, i32, i32) {
    %c0_i32 = arith.constant 0 : i32
    %c0_i32_0 = arith.constant 0 : i32
    %c0_i32_1 = arith.constant 0 : i32
    return %arg0, %c0_i32, %c0_i32_0 : i32, i32, i32
  }
}

</mosaic_0001>

<llo_original>
// kernel: complete_model_forward.1
$region0: #{complete_model_forward.1}
  #allocation0 [shape = 'u32[]', space=smem, size = 0x4, offset = 0x4, fixed_abs, tag = 'smem constant byte address 0x4 - core index']
  #allocation1 [shape = 'u32[72,128]{1,0:T(1,128)}', space=vmem, size = 0x9000, scoped, tag = 'internal scratch']
  #allocation2 [shape = 'f32[8,1]{1,0:T(8,128)}', space=vmem, size = 0x1000, scoped, tag = 'scratch operand']
  #allocation3 [shape = 'f32[8,1]{1,0:T(8,128)}', space=vmem, size = 0x1000, scoped, tag = 'scratch operand']
  #allocation4 [shape = 'f32[8,1]{1,0:T(8,128)}', space=vmem, size = 0x1000, scoped, tag = 'scratch operand']
  %s0 = inlined_call_operand.vmem [shape: f32[16,32], index: 0, kind: input, shape index: {}]
  %s1 = inlined_call_operand.hbm [shape: bf16[32,512], index: 1, kind: input, shape index: {}]
  %s2 = inlined_call_operand.hbm [shape: f32[1,512], index: 2, kind: input, shape index: {}]
  %s3 = inlined_call_operand.vmem [shape: s32[16,1], index: 3, kind: input, shape index: {}]
  %s4 = inlined_call_operand.hbm [shape: bf16[16,512], index: 4, kind: output, shape index: {0}]
  %s5 = inlined_call_operand.vmem [shape: f32[2,1,1], index: 5, kind: output, shape index: {1}]
  %6 = xla_tuple %s4, %s5
  %s7 = sld [smem:[#allocation0]]
  $region69: #{complete_model_forward.1} parent=0
    _
  %s9 = ssub.s32 1, %s7
  %s10 = scalar_select 0, %s9, %s7
  $region1: #{complete_model_forward.1} parent=0
    #allocation5 [shape = 'u8[32768]{0}', space=vmem, size = 0x8000, scoped, tag = 'input window, operand 1, single buffered']
    #allocation6 [shape = 's32[2]{0}', space=sflag, size = 0x8, scoped, tag = 'scoped memory for complete_model_forward.1']
    #allocation7 [shape = 's32[2]{0}', space=sflag, size = 0x8, scoped, tag = 'scoped memory for complete_model_forward.1']
    #allocation8 [shape = 'u8[2048]{0}', space=vmem, size = 0x800, scoped, tag = 'input window, operand 2, single buffered']
    #allocation9 [shape = 's32[1]{0}', space=sflag, size = 0x4, scoped, tag = 'scoped memory for complete_model_forward.1']
    #allocation10 [shape = 'u8[16384]{0}', space=vmem, size = 0x4000, scoped, tag = 'output window, operand 0']
    %11 = vsyncpa [#allocation6], 0
    %12 = vsyncpa [#allocation9], 0
    %13 = vsyncpa [#allocation7], 0
    %s14 = scalar_lea.sflag [#allocation7], 1
    %15 = vsyncpa %s14, 0
    loop: start=0, step=1, limit=4
    $region2: #{complete_model_forward.1} parent=1 // loop_pre_header
      _
    $region3: #{complete_model_forward.1} parent=1 // loop_header
      %s17 = sphi 0, %s21
      %p18 = scmp.ge.s32.totalorder %s17, 4
      %s24 = sphi 0, %s36
      %s25 = sphi 0, %s32
      %s26 = sphi 0, %s24
      %s27 = sphi 0, %s25
      %s28 = sphi 0, %s26
      %s29 = sphi 0, %s27
      %s39 = sphi 0, %s41
      %s42 = sphi 0, %s39
      %s43 = sphi 0, %s42
      %s59 = sphi 0, %s43
      %s65 = sphi 0, %s67
      %s68 = sphi 0, %s65
      %s69 = sphi 0, %s68
      %s85 = sphi 0, %s69
      %s91 = sphi 0, %s93
      %s94 = sphi 0, %s91
      %s95 = sphi 0, %s94
      %s111 = sphi 0, %s95
      %s117 = sphi 0, %s119
      %s120 = sphi 0, %s117
      %s121 = sphi 0, %s120
      %s137 = sphi 0, %s121
      %s143 = sphi 0, %s145
      %s146 = sphi 0, %s143
      %s147 = sphi 0, %s146
      %s163 = sphi 0, %s147
      %s169 = sphi 0, %s171
      %s172 = sphi 0, %s169
      %s173 = sphi 0, %s172
      %s189 = sphi 0, %s173
    $region4: #{complete_model_forward.1} parent=1 // loop_header_branch
      %20 = sbr.rel (%p18) target = $region8
    $region5: #{complete_model_forward.1} parent=1 // loop_body
      %s22 = ssub.s32 %s17, 1
      %s23 = ssub.s32 %s17, 2
      %s30 = sadd.s32 1, %s25
      %p31 = scmp.ge.s32.totalorder %s30, 1
      %s32 = scalar_select %p31, 0, %s30
      %s33 = sadd.s32 1, %s24
      %s34 = scalar_select %p31, %s33, %s24
      %p35 = scmp.ge.s32.totalorder %s34, 2
      %s36 = scalar_select %p35, 0, %s34
      %s37 = ssub.s32 %s24, %s36
      %p38 = scmp.eq.s32.totalorder %s37, 0
      %s40 = sadd.s32 %s39, 1
      %s41 = scalar_select %p38, %s39, %s40
      %p44 = pneg %p38
      %p45 = scmp.eq.s32.totalorder %s17, 1
      %p46 = por %p44, %p45
      %p47 = scmp.ne.s32.totalorder %s39, %s42
      %p48 = scmp.eq.s32.totalorder %s17, 0
      %p49 = por %p47, %p48
      %p50 = scmp.ne.s32.totalorder %s39, %s42
      %p51 = scmp.eq.s32.totalorder %s22, 1
      %p52 = por %p50, %p51
      %p53 = scmp.ne.s32.totalorder %s42, %s43
      %p54 = scmp.eq.s32.totalorder %s22, 0
      %p55 = por %p53, %p54
      %p56 = scmp.ne.s32.totalorder %s42, %s43
      %p57 = scmp.eq.s32.totalorder %s23, 1
      %p58 = por %p56, %p57
      %p60 = scmp.ne.s32.totalorder %s43, %s59
      %p61 = scmp.eq.s32.totalorder %s23, 0
      %p62 = por %p60, %p61
      %s63 = ssub.s32 %s25, %s32
      %p64 = scmp.eq.s32.totalorder %s63, 0
      %s66 = sadd.s32 %s65, 1
      %s67 = scalar_select %p64, %s65, %s66
      %p70 = pneg %p64
      %p71 = scmp.eq.s32.totalorder %s17, 1
      %p72 = por %p70, %p71
      %p73 = scmp.ne.s32.totalorder %s65, %s68
      %p74 = scmp.eq.s32.totalorder %s17, 0
      %p75 = por %p73, %p74
      %p76 = scmp.ne.s32.totalorder %s65, %s68
      %p77 = scmp.eq.s32.totalorder %s22, 1
      %p78 = por %p76, %p77
      %p79 = scmp.ne.s32.totalorder %s68, %s69
      %p80 = scmp.eq.s32.totalorder %s22, 0
      %p81 = por %p79, %p80
      %p82 = scmp.ne.s32.totalorder %s68, %s69
      %p83 = scmp.eq.s32.totalorder %s23, 1
      %p84 = por %p82, %p83
      %p86 = scmp.ne.s32.totalorder %s69, %s85
      %p87 = scmp.eq.s32.totalorder %s23, 0
      %p88 = por %p86, %p87
      %s89 = ssub.s32 %s25, %s32
      %p90 = scmp.eq.s32.totalorder %s89, 0
      %s92 = sadd.s32 %s91, 1
      %s93 = scalar_select %p90, %s91, %s92
      %p96 = pneg %p90
      %p97 = scmp.eq.s32.totalorder %s17, 1
      %p98 = por %p96, %p97
      %p99 = scmp.ne.s32.totalorder %s91, %s94
      %p100 = scmp.eq.s32.totalorder %s17, 0
      %p101 = por %p99, %p100
      %p102 = scmp.ne.s32.totalorder %s91, %s94
      %p103 = scmp.eq.s32.totalorder %s22, 1
      %p104 = por %p102, %p103
      %p105 = scmp.ne.s32.totalorder %s94, %s95
      %p106 = scmp.eq.s32.totalorder %s22, 0
      %p107 = por %p105, %p106
      %p108 = scmp.ne.s32.totalorder %s94, %s95
      %p109 = scmp.eq.s32.totalorder %s23, 1
      %p110 = por %p108, %p109
      %p112 = scmp.ne.s32.totalorder %s95, %s111
      %p113 = scmp.eq.s32.totalorder %s23, 0
      %p114 = por %p112, %p113
      %s115 = ssub.s32 %s24, %s36
      %p116 = scmp.eq.s32.totalorder %s115, 0
      %s118 = sadd.s32 %s117, 1
      %s119 = scalar_select %p116, %s117, %s118
      %p122 = pneg %p116
      %p123 = scmp.eq.s32.totalorder %s17, 1
      %p124 = por %p122, %p123
      %p125 = scmp.ne.s32.totalorder %s117, %s120
      %p126 = scmp.eq.s32.totalorder %s17, 0
      %p127 = por %p125, %p126
      %p128 = scmp.ne.s32.totalorder %s117, %s120
      %p129 = scmp.eq.s32.totalorder %s22, 1
      %p130 = por %p128, %p129
      %p131 = scmp.ne.s32.totalorder %s120, %s121
      %p132 = scmp.eq.s32.totalorder %s22, 0
      %p133 = por %p131, %p132
      %p134 = scmp.ne.s32.totalorder %s120, %s121
      %p135 = scmp.eq.s32.totalorder %s23, 1
      %p136 = por %p134, %p135
      %p138 = scmp.ne.s32.totalorder %s121, %s137
      %p139 = scmp.eq.s32.totalorder %s23, 0
      %p140 = por %p138, %p139
      %s141 = ssub.s32 %s24, %s36
      %p142 = scmp.eq.s32.totalorder %s141, 0
      %s144 = sadd.s32 %s143, 1
      %s145 = scalar_select %p142, %s143, %s144
      %p148 = pneg %p142
      %p149 = scmp.eq.s32.totalorder %s17, 1
      %p150 = por %p148, %p149
      %p151 = scmp.ne.s32.totalorder %s143, %s146
      %p152 = scmp.eq.s32.totalorder %s17, 0
      %p153 = por %p151, %p152
      %p154 = scmp.ne.s32.totalorder %s143, %s146
      %p155 = scmp.eq.s32.totalorder %s22, 1
      %p156 = por %p154, %p155
      %p157 = scmp.ne.s32.totalorder %s146, %s147
      %p158 = scmp.eq.s32.totalorder %s22, 0
      %p159 = por %p157, %p158
      %p160 = scmp.ne.s32.totalorder %s146, %s147
      %p161 = scmp.eq.s32.totalorder %s23, 1
      %p162 = por %p160, %p161
      %p164 = scmp.ne.s32.totalorder %s147, %s163
      %p165 = scmp.eq.s32.totalorder %s23, 0
      %p166 = por %p164, %p165
      %s167 = ssub.s32 %s24, %s36
      %p168 = scmp.eq.s32.totalorder %s167, 0
      %s170 = sadd.s32 %s169, 1
      %s171 = scalar_select %p168, %s169, %s170
      %p174 = pneg %p168
      %p175 = scmp.eq.s32.totalorder %s17, 1
      %p176 = por %p174, %p175
      %p177 = scmp.ne.s32.totalorder %s169, %s172
      %p178 = scmp.eq.s32.totalorder %s17, 0
      %p179 = por %p177, %p178
      %p180 = scmp.ne.s32.totalorder %s169, %s172
      %p181 = scmp.eq.s32.totalorder %s22, 1
      %p182 = por %p180, %p181
      %p183 = scmp.ne.s32.totalorder %s172, %s173
      %p184 = scmp.eq.s32.totalorder %s22, 0
      %p185 = por %p183, %p184
      %p186 = scmp.ne.s32.totalorder %s172, %s173
      %p187 = scmp.eq.s32.totalorder %s23, 1
      %p188 = por %p186, %p187
      %p190 = scmp.ne.s32.totalorder %s173, %s189
      %p191 = scmp.eq.s32.totalorder %s23, 0
      %p192 = por %p190, %p191
      %p193 = scmp.le.s32.totalorder 1, %s17
      %p194 = scmp.lt.s32.totalorder %s17, 3
      %p195 = pnand %p193, %p194
      %p196 = pneg %p195
      // Predicated region
      $region9: #{complete_model_forward.1} parent=5 // pred_check
        _
      $region10: #{complete_model_forward.1} parent=5 // pred_check_branch
        %198 = sbr.rel (%p195) target = $region12
      $region11: #{complete_model_forward.1} parent=5 // pred_region
        %s199 = ssub.s32 %s17, 1
        // Predicated region
        $region13: #{complete_model_forward.1} parent=11 // pred_check
          %p200 = pneg %p81
        $region14: #{complete_model_forward.1} parent=11 // pred_check_branch
          %202 = sbr.rel (%p200) target = $region16
        $region15: #{complete_model_forward.1} parent=11 // pred_region
          %s203 = smul.u32 4, %s27
          %205 = vsyncadd [#allocation6], 0
          %s206 = smul.addr %s203, 4
          %s207 = scalar_lea.hbm %s1, %s206
          %s208 = sshll.u32 %s207, 4
          %s209 = int_to_ptr.hbm [resolvable:$true] %s208
          %s210 = sshll.u32 [#allocation5], 4
          %s211 = int_to_ptr.vmem [resolvable:$true] %s210
          %216 = dma.hbm_to_vmem [thread:$0]  %s209, 1024, %s211, [#allocation6], 256, 256, 16
        $region16: #{complete_model_forward.1} parent=11 // pred_fallthru
          _
        // Predicated region
        $region17: #{complete_model_forward.1} parent=11 // pred_check
          %p217 = pneg %p107
        $region18: #{complete_model_forward.1} parent=11 // pred_check_branch
          %219 = sbr.rel (%p217) target = $region20
        $region19: #{complete_model_forward.1} parent=11 // pred_region
          %s220 = smul.u32 4, %s27
          %222 = vsyncadd [#allocation9], 0
          %s223 = scalar_lea.hbm %s2, %s220
          %s225 = sshll.u32 %s223, 4
          %s226 = int_to_ptr.hbm [resolvable:$true] %s225
          %s227 = sshll.u32 [#allocation8], 4
          %s228 = int_to_ptr.vmem [resolvable:$true] %s227
          %230 = dma.hbm_to_vmem [thread:$0]  %s226, 64, %s228, [#allocation9]
        $region20: #{complete_model_forward.1} parent=11 // pred_fallthru
          _
      $region12: #{complete_model_forward.1} parent=5 // pred_fallthru
        _
      %p231 = scmp.lt.s32.totalorder %s17, 2
      // Predicated region
      $region21: #{complete_model_forward.1} parent=5 // pred_check
        %p232 = pneg %p231
      $region22: #{complete_model_forward.1} parent=5 // pred_check_branch
        %234 = sbr.rel (%p232) target = $region24
      $region23: #{complete_model_forward.1} parent=5 // pred_region
        // Predicated region
        $region25: #{complete_model_forward.1} parent=23 // pred_check
          %p235 = pneg %p49
        $region26: #{complete_model_forward.1} parent=23 // pred_check_branch
          %237 = sbr.rel (%p235) target = $region28
        $region27: #{complete_model_forward.1} parent=23 // pred_region
          %p238 = scmp.lt.s32.totalorder %s24, 1
          %s239 = scalar_select %p238, %s24, 1
          %s240 = smul.addr %s239, 8
          %s241 = scalar_lea.vmem %s0, %s240
        $region28: #{complete_model_forward.1} parent=23 // pred_fallthru
          _
        // Predicated region
        $region29: #{complete_model_forward.1} parent=23 // pred_check
          %p242 = pneg %p127
        $region30: #{complete_model_forward.1} parent=23 // pred_check_branch
          %244 = sbr.rel (%p242) target = $region32
        $region31: #{complete_model_forward.1} parent=23 // pred_region
          %p245 = scmp.lt.s32.totalorder %s24, 1
          %s246 = scalar_select %p245, %s24, 1
          %s247 = smul.addr %s246, 8
          %s248 = scalar_lea.vmem %s3, %s247
        $region32: #{complete_model_forward.1} parent=23 // pred_fallthru
          _
      $region24: #{complete_model_forward.1} parent=5 // pred_fallthru
        _
      %p249 = scmp.le.s32.totalorder 1, %s17
      %p250 = scmp.lt.s32.totalorder %s17, 3
      %p251 = pnand %p249, %p250
      %p252 = pneg %p251
      // Predicated region
      $region33: #{complete_model_forward.1} parent=5 // pred_check
        _
      $region34: #{complete_model_forward.1} parent=5 // pred_check_branch
        %254 = sbr.rel (%p251) target = $region36
      $region35: #{complete_model_forward.1} parent=5 // pred_region
        %s255 = ssub.s32 %s17, 1
        // Predicated region
        $region37: #{complete_model_forward.1} parent=35 // pred_check
          %p256 = pneg %p81
        $region38: #{complete_model_forward.1} parent=35 // pred_check_branch
          %258 = sbr.rel (%p256) target = $region40
        $region39: #{complete_model_forward.1} parent=35 // pred_region
          %260 = dma.done [#allocation6], 1024
        $region40: #{complete_model_forward.1} parent=35 // pred_fallthru
          _
        // Predicated region
        $region41: #{complete_model_forward.1} parent=35 // pred_check
          %p261 = pneg %p107
        $region42: #{complete_model_forward.1} parent=35 // pred_check_branch
          %263 = sbr.rel (%p261) target = $region44
        $region43: #{complete_model_forward.1} parent=35 // pred_region
          %265 = dma.done [#allocation9], 64
        $region44: #{complete_model_forward.1} parent=35 // pred_fallthru
          _
        %p266 = scmp.lt.s32.totalorder %s26, 1
        %s267 = scalar_select %p266, %s26, 1
        %s268 = smul.addr %s267, 8
        %s269 = scalar_lea.vmem %s0, %s268
        %p270 = pneg %p55
        %p271 = pneg %p52
        %p272 = pneg %p81
        %p273 = pneg %p78
        %p274 = pneg %p107
        %p275 = pneg %p104
        %p276 = scmp.lt.s32.totalorder %s26, 1
        %s277 = scalar_select %p276, %s26, 1
        %s278 = smul.addr %s277, 8
        %s279 = scalar_lea.vmem %s3, %s278
        %p280 = pneg %p133
        %p281 = pneg %p130
        %p282 = pneg %p159
        %p283 = pneg %p156
        %s284 = sand.u32 %s146, 1
        %s285 = scalar_lea.sflag [#allocation7], %s284
        %s286 = sand.u32 %s146, 1
        %s287 = smul.addr %s286, 16
        %s288 = scalar_lea.vmem [#allocation10], %s287
        %p289 = pneg %p185
        %p290 = pneg %p182
        %p291 = scmp.lt.s32.totalorder %s26, 1
        %s292 = scalar_select %p291, %s26, 1
        %s293 = scalar_lea.vmem %s5, %s292
        %p294 = scmp.lt.s32.totalorder %s26, 1
        %s295 = scalar_select %p294, %s26, 1
        %s296 = smul.addr %s295, 8
        %s297 = scalar_lea.vmem %s0, %s296
        %s298 = smul.u32 4, %s27
        %s299 = smul.u32 4, %s27
        %p300 = scmp.lt.s32.totalorder %s26, 1
        %s301 = scalar_select %p300, %s26, 1
        %s302 = smul.addr %s301, 8
        %s303 = scalar_lea.vmem %s3, %s302
        %p304 = scmp.lt.s32.totalorder %s26, 1
        %s305 = scalar_select %p304, %s26, 1
        %s306 = scalar_lea.vmem %s5, %s305
        %p308 = scmp.eq.s32.totalorder %s27, 0
        // Predicated region
        $region45: #{complete_model_forward.1} parent=35 // pred_check
          %p309 = pneg %p308
        $region46: #{complete_model_forward.1} parent=35 // pred_check_branch
          %311 = sbr.rel (%p309) target = $region48
        $region47: #{complete_model_forward.1} parent=35 // pred_region
          %vm312 = vcmask 7168
          %313 = vst.msk [vmem:[#allocation2] sm:$0xff] %vm312, -inf
          %314 = vst.msk [vmem:[#allocation3] sm:$0xff] %vm312, 0.0
          %315 = vst.msk [vmem:[#allocation4] sm:$0xff] %vm312, 0.0
        $region48: #{complete_model_forward.1} parent=35 // pred_fallthru
          _
        %v316 = vld [vmem:[%s297] sm:$0xff]
        %v317 = vpack.c.bf16 %v316, %v316
        %v318 = vld [vmem:[#allocation5] sm:$0xff]
        %v319 = vld [vmem:[#allocation5 + $0x8] sm:$0xff]
        %v320 = vld [vmem:[#allocation5 + $0x10] sm:$0xff]
        %v321 = vld [vmem:[#allocation5 + $0x18] sm:$0xff]
        %v322 = vld [vmem:[#allocation5 + $0x20] sm:$0xff]
        %v323 = vld [vmem:[#allocation5 + $0x28] sm:$0xff]
        %v324 = vld [vmem:[#allocation5 + $0x30] sm:$0xff]
        %v325 = vld [vmem:[#allocation5 + $0x38] sm:$0xff]
        %v326 = vld [vmem:[#allocation8] sm:$0xf]
        %v328 = vperm.slane %v326, 0
        %v329 = vperm.slane %v326, 1
        %v330 = vperm.slane %v326, 2
        %v331 = vperm.slane %v326, 3
        %v344 = vunpack.c.l.b16 %v318
        %v345 = vunpack.c.h.b16 %v318
        %v346 = vunpack.c.l.b16 %v319
        %v347 = vunpack.c.h.b16 %v319
        %v348 = vunpack.c.l.b16 %v320
        %v349 = vunpack.c.h.b16 %v320
        %v350 = vunpack.c.l.b16 %v321
        %v351 = vunpack.c.h.b16 %v321
        %v352 = vunpack.c.l.b16 %v322
        %v353 = vunpack.c.h.b16 %v322
        %v354 = vunpack.c.l.b16 %v323
        %v355 = vunpack.c.h.b16 %v323
        %v356 = vunpack.c.l.b16 %v324
        %v357 = vunpack.c.h.b16 %v324
        %v358 = vunpack.c.l.b16 %v325
        %v359 = vunpack.c.h.b16 %v325
        %v360 = vpack.c.b16 %v348, %v344
        %v361 = vpack.c.b16 %v349, %v345
        %v362 = vpack.c.b16 %v350, %v346
        %v363 = vpack.c.b16 %v351, %v347
        %v364 = vpack.c.b16 %v356, %v352
        %v365 = vpack.c.b16 %v357, %v353
        %v366 = vpack.c.b16 %v358, %v354
        %v367 = vpack.c.b16 %v359, %v355
        %vm376 = vcmask 261120
        %v378 = vsel %vm376, %v317, 0
        %380 = vmatpush.bf16.msra.mxu0 0
        %381 = vmatpush.bf16.msra.mxu0 0
        %382 = vmatpush.bf16.msra.mxu0 0
        %383 = vmatpush.bf16.msra.mxu0 0
        %384 = vmatpush.bf16.msra.mxu0 0
        %385 = vmatpush.bf16.msra.mxu0 0
        %386 = vmatpush.bf16.msra.mxu0 %v364
        %387 = vmatpush.bf16.msra.mxu0 %v360
        %388 = vmatmul.bf16.gmra.mxu0 %v378
        %v389 = vpop.f32.mrf.mxu0
        %v390 = vadd.f32 %v328, %v389
        %v391 = vpop.f32.mrf.mxu0
        %392 = vdwg.mxu0
        %393 = vmatpush.bf16.msra.mxu0 0
        %394 = vmatpush.bf16.msra.mxu0 0
        %395 = vmatpush.bf16.msra.mxu0 0
        %396 = vmatpush.bf16.msra.mxu0 0
        %397 = vmatpush.bf16.msra.mxu0 0
        %398 = vmatpush.bf16.msra.mxu0 0
        %399 = vmatpush.bf16.msra.mxu0 %v365
        %400 = vmatpush.bf16.msra.mxu0 %v361
        %401 = vmatmul.bf16.gmra.mxu0 %v378
        %v402 = vpop.f32.mrf.mxu0
        %v403 = vadd.f32 %v329, %v402
        %v404 = vpop.f32.mrf.mxu0
        %405 = vdwg.mxu0
        %406 = vmatpush.bf16.msra.mxu0 0
        %407 = vmatpush.bf16.msra.mxu0 0
        %408 = vmatpush.bf16.msra.mxu0 0
        %409 = vmatpush.bf16.msra.mxu0 0
        %410 = vmatpush.bf16.msra.mxu0 0
        %411 = vmatpush.bf16.msra.mxu0 0
        %412 = vmatpush.bf16.msra.mxu0 %v366
        %413 = vmatpush.bf16.msra.mxu0 %v362
        %414 = vmatmul.bf16.gmra.mxu0 %v378
        %v415 = vpop.f32.mrf.mxu0
        %v416 = vadd.f32 %v330, %v415
        %v417 = vpop.f32.mrf.mxu0
        %418 = vdwg.mxu0
        %419 = vmatpush.bf16.msra.mxu0 0
        %420 = vmatpush.bf16.msra.mxu0 0
        %421 = vmatpush.bf16.msra.mxu0 0
        %422 = vmatpush.bf16.msra.mxu0 0
        %423 = vmatpush.bf16.msra.mxu0 0
        %424 = vmatpush.bf16.msra.mxu0 0
        %425 = vmatpush.bf16.msra.mxu0 %v367
        %426 = vmatpush.bf16.msra.mxu0 %v363
        %427 = vmatmul.bf16.gmra.mxu0 %v378
        %v428 = vpop.f32.mrf.mxu0
        %v429 = vadd.f32 %v331, %v428
        %v430 = vpop.f32.mrf.mxu0
        %431 = vdwg.mxu0
        %v432 = vmax.f32 %v390, %v403
        %v433 = vmax.f32 %v416, %v429
        %v434 = vmax.f32 %v432, %v433
        %435 = vmax.xlane.f32.xlu0 %v434
        %v436 = vpop.xlane.xlu0 %435
        %v437 = vsub.f32 %v390, %v436
        %v438 = vsub.f32 %v403, %v436
        %v439 = vsub.f32 %v416, %v436
        %v440 = vsub.f32 %v429, %v436
        %v441 = vmul.f32 %v437, 1.442695
        %v442 = vpow.pop %v441
        %v443 = vmul.f32 %v438, 1.442695
        %v444 = vpow.pop %v443
        %v445 = vmul.f32 %v439, 1.442695
        %v446 = vpow.pop %v445
        %v447 = vmul.f32 %v440, 1.442695
        %v448 = vpow.pop %v447
        %v449 = vadd.f32 %v442, %v444
        %v450 = vadd.f32 %v449, %v446
        %v451 = vadd.f32 %v450, %v448
        %452 = vadd.xlane.f32.xlu0 %v451
        %v453 = vpop.xlane.xlu0 %452
        %v454 = vlaneseq
        %v455 = vand.u32 %v454, 127
        %v456 = vadd.s32 %v455, 128
        %v457 = vadd.s32 %v455, 256
        %v458 = vadd.s32 %v455, 384
        %v459 = vld [vmem:[%s303] sm:$0xff]
        %s460 = smul.u32 %s27, 512
        %v461 = vstv %s460
        %v462 = vsub.s32 %v459, %v461
        %v463 = vld [vmem:[#allocation4] sm:$0xff]
        %464 = vset.pattern.permute.xlu0 0
        %465 = vperm.xlu0 %464, %v462
        %v466 = vpop.permute.xlu0 %465
        %vm467 = vcmp.eq.s32.totalorder %v455, %v466
        %vm468 = vcmp.eq.s32.totalorder %v456, %v466
        %vm469 = vcmp.eq.s32.totalorder %v457, %v466
        %vm470 = vcmp.eq.s32.totalorder %v458, %v466
        %v471 = vsel %vm467, %v390, 0.0
        %v472 = vsel %vm468, %v403, 0.0
        %v473 = vsel %vm469, %v416, 0.0
        %v474 = vsel %vm470, %v429, 0.0
        %v475 = vadd.f32 %v471, %v472
        %v476 = vadd.f32 %v475, %v473
        %v477 = vadd.f32 %v476, %v474
        %478 = vadd.xlane.f32.xlu0 %v477
        %v479 = vpop.xlane.xlu0 %478
        %v480 = vadd.f32 %v463, %v479
        %vm481 = vcmask 7168
        %482 = vst.msk [vmem:[#allocation4] sm:$0xff] %vm481, %v480
        %v483 = vrcp.pop %v453
        %v484 = vmul.f32 %v442, %v483
        %v485 = vmul.f32 %v444, %v483
        %v486 = vmul.f32 %v446, %v483
        %v487 = vmul.f32 %v448, %v483
        %v488 = vpack.c.bf16 %v485, %v484
        %v489 = vpack.c.bf16 %v487, %v486
        %490 = vst [vmem:[%s288] sm:$0xff] %v488
        %491 = vst [vmem:[%s288 + $0x8] sm:$0xff] %v489
        %v492 = vlog2.pop %v453
        %v493 = vmul.f32 %v492, 0.6931472
        %v494 = vadd.f32 %v436, %v493
        %v495 = vld [vmem:[#allocation4] sm:$0xff]
        %v496 = vsub.f32 %v494, %v495
        %v497 = vsel %vm481, %v496, 0.0
        %498 = vadd.xlane.f32.xlu0 %v497
        %v499 = vpop.xlane.xlu0 %498
        %v500 = vrot.slane %v499, 4
        %v501 = vadd.f32 %v499, %v500
        %v502 = vrot.slane %v501, 2
        %v503 = vadd.f32 %v501, %v502
        %v504 = vrot.slane %v503, 1
        %v505 = vadd.f32 %v503, %v504
        %s506 = vtos %v505
        %v507 = vstv %s506
        %vm508 = vcmask 0
        %509 = vst.msk [vmem:[%s306] sm:$0x1] %vm508, %v507
        %s510 = sand.u32 %s146, 1
        %s511 = scalar_lea.sflag [#allocation7], %s510
        %s512 = sand.u32 %s146, 1
        %s513 = smul.addr %s512, 16
        %s514 = scalar_lea.vmem [#allocation10], %s513
        %p515 = scmp.lt.s32.totalorder %s26, 1
        %s516 = scalar_select %p515, %s26, 1
        %s517 = scalar_lea.vmem %s5, %s516
        // Predicated region
        $region49: #{complete_model_forward.1} parent=35 // pred_check
          %p518 = pneg %p156
        $region50: #{complete_model_forward.1} parent=35 // pred_check_branch
          %520 = sbr.rel (%p518) target = $region52
        $region51: #{complete_model_forward.1} parent=35 // pred_region
          %522 = vsyncadd %s511, 0
          %s523 = smul.addr %s26, 4
          %s524 = smul.addr %s523, 4
          %s525 = scalar_lea.hbm %s4, %s524
          %s527 = sshll.u32 %s514, 4
          %s528 = int_to_ptr.vmem [resolvable:$true] %s527
          %s529 = sshll.u32 %s525, 4
          %s530 = int_to_ptr.hbm [resolvable:$true] %s529
          %532 = dma.vmem_to_hbm [thread:$0]  %s528, 256, %s530, %s511
        $region52: #{complete_model_forward.1} parent=35 // pred_fallthru
          _
        // Predicated region
        $region53: #{complete_model_forward.1} parent=35 // pred_check
          %p533 = pneg %p182
        $region54: #{complete_model_forward.1} parent=35 // pred_check_branch
          %535 = sbr.rel (%p533) target = $region56
        $region55: #{complete_model_forward.1} parent=35 // pred_region
          _
        $region56: #{complete_model_forward.1} parent=35 // pred_fallthru
          _
      $region36: #{complete_model_forward.1} parent=5 // pred_fallthru
        _
      %p536 = scmp.le.s32.totalorder 2, %s17
      // Predicated region
      $region57: #{complete_model_forward.1} parent=5 // pred_check
        %p537 = pneg %p536
      $region58: #{complete_model_forward.1} parent=5 // pred_check_branch
        %539 = sbr.rel (%p537) target = $region60
      $region59: #{complete_model_forward.1} parent=5 // pred_region
        %s540 = ssub.s32 %s17, 2
        // Predicated region
        $region61: #{complete_model_forward.1} parent=59 // pred_check
          %p541 = pneg %p162
        $region62: #{complete_model_forward.1} parent=59 // pred_check_branch
          %543 = sbr.rel (%p541) target = $region64
        $region63: #{complete_model_forward.1} parent=59 // pred_region
          %s544 = sand.u32 %s147, 1
          %s545 = scalar_lea.sflag [#allocation7], %s544
          %s546 = sand.u32 %s147, 1
          %s547 = smul.addr %s546, 16
          %s548 = scalar_lea.vmem [#allocation10], %s547
          %550 = dma.done %s545, 256
        $region64: #{complete_model_forward.1} parent=59 // pred_fallthru
          _
        // Predicated region
        $region65: #{complete_model_forward.1} parent=59 // pred_check
          %p551 = pneg %p188
        $region66: #{complete_model_forward.1} parent=59 // pred_check_branch
          %553 = sbr.rel (%p551) target = $region68
        $region67: #{complete_model_forward.1} parent=59 // pred_region
          %p554 = scmp.lt.s32.totalorder %s28, 1
          %s555 = scalar_select %p554, %s28, 1
          %s556 = scalar_lea.vmem %s5, %s555
        $region68: #{complete_model_forward.1} parent=59 // pred_fallthru
          _
      $region60: #{complete_model_forward.1} parent=5 // pred_fallthru
        _
    $region6: #{complete_model_forward.1} parent=1 // loop_footer
      %s21 = sadd.s32 1, %s17
    $region7: #{complete_model_forward.1} parent=1 // loop_footer_branch
      %16 = sbr.rel target = $region3
    $region8: #{complete_model_forward.1} parent=1 // loop_exit
      _
    %557 = vsyncpa [#allocation6], 1
    %s558 = scalar_lea.sflag [#allocation6], 1
    %559 = vsyncpa %s558, 1
    %560 = vsyncpa [#allocation9], 1
    %561 = vsyncpa [#allocation7], 1
    %s562 = scalar_lea.sflag [#allocation7], 1
    %563 = vsyncpa %s562, 1

</llo_original>
